<compile_context>
chip_gen: v6e
topology: v6e:2x2x1
jax: 0.10.0
libtpu: 0.0.40
codegen_flags: <defaults>
</compile_context>

<pallas_src>
import jax
import jax.numpy as jnp
from jax.experimental import pallas as pl
from jax.experimental.pallas import tpu as pltpu

_LANE = 128


def _attn_pool_kernel(vecs_ref, value_ref, w1_ref, b1_ref, w2_ref, out_ref):
    # vecs_ref : (TB, L, D2) f32    value_ref : (TB, L, D3) f32
    # w1_ref   : (D2, Hp)   bf16    b1_ref    : (1, Hp) f32    w2_ref : (1, Hp) f32
    # out_ref  : (TB, D3)   f32
    TB, L, D2 = vecs_ref.shape

    # att_dense + tanh: one bf16 MXU matmul over the merged (TB*L) rows with
    # f32 accumulation.  (The merge is layout-free when L % 8 == 0; correct
    # regardless.)
    vecs2d = vecs_ref[...].reshape(TB * L, D2).astype(jnp.bfloat16)
    h = jnp.tanh(
        jnp.dot(vecs2d, w1_ref[...], preferred_element_type=jnp.float32)
        + b1_ref[...]
    )                                                        # (TB*L, Hp) f32
    # TODO(synk): if a bundle dump shows the kernel EUP-bound on v6e/v7x, a
    # bf16 tanh doubles EUP throughput there; kept f32 for v5e compatibility.

    # dense(200 -> 1): VPU multiply + lane reduce.  keepdims keeps L on the
    # sublane axis for the whole score path (no lane<->sublane relayout).
    scores = jnp.sum(h * w2_ref[...], axis=-1, keepdims=True)   # (TB*L, 1)
    scores = scores.reshape(TB, L, 1)

    # Softmax over L (dense.bias is a uniform shift -> folded away); defer the
    # normalization until after pooling.
    m = jnp.max(scores, axis=1, keepdims=True)               # (TB, 1, 1)
    e = jnp.exp(scores - m)                                  # (TB, L, 1)
    denom = jnp.sum(e, axis=1, keepdims=True)                # (TB, 1, 1)

    # Attention-weighted pooling: lane-broadcast multiply + sublane reduce.
    pooled = jnp.sum(value_ref[...] * e, axis=1)             # (TB, D3)

    inv = pl.reciprocal(denom[:, 0, :], approx=True)         # (TB, 1) on the EUP
    out_ref[...] = (pooled * inv).astype(out_ref.dtype)


def _pick_tb(B, L, D2, D3, Hp, vmem_budget_bytes):
    """Batch tile: sized from a lane-padded VMEM budget, multiple of 8 (or == B),
    dividing B when possible, with >= 2 grid steps for large batches."""
    d2p = pl.cdiv(D2, _LANE) * _LANE
    d3p = pl.cdiv(D3, _LANE) * _LANE
    # Per-batch-element VMEM (f32, minor dims padded to 128 lanes):
    per_elem = (
        2 * L * d2p * 4        # vecs block (double-buffered)
        + 2 * L * d3p * 4      # value block (double-buffered)
        + L * Hp * 4           # f32 `h` temp
        + L * Hp * 2           # bf16 matmul operand
        + 4 * L * _LANE * 4    # score / exp / broadcast temps (minor dim 1 -> 128 lanes)
    )
    tb_cap = max(8, min(vmem_budget_bytes // per_elem, 8192 // max(L, 1)))

    if B <= tb_cap:
        # Whole batch fits in one block.  Split into two steps when the batch
        # is big enough to matter so the second v7x TensorCore gets work.
        if B >= 128 and B % 16 == 0:
            return B // 2
        return B

    cap8 = (tb_cap // 8) * 8
    for d in range(cap8, 7, -8):                 # largest mult-of-8 divisor of B
        if B % d == 0:
            return d
    return cap8                                  # fallback: batch gets padded


def attentive_pooling_qky(vecs, value, w1, b1, w2, b2, *, tb=None):
    """vecs: (B, L, D2), value: (B, L, D3), w1: (D2, H) (= att_dense.weight^T),
    b1: (1, H) (= att_dense.bias), w2: (1, H) (= dense.weight),
    b2: (1, 1) (= dense.bias, softmax-invariant)."""
    del b2  # uniform shift of the pre-softmax scores: cancels exactly in softmax
    B, L, D2 = vecs.shape
    D3 = value.shape[-1]
    H = w1.shape[1]

    # Pad H (200) to a full lane multiple (256). Zero pads are exact no-ops:
    # tanh(0 + 0) = 0 and w2 pad = 0 kills their contribution to the scores.
    Hp = pl.cdiv(H, _LANE) * _LANE
    if Hp != H:
        w1 = jnp.pad(w1, ((0, 0), (0, Hp - H)))
        b1 = jnp.pad(b1, ((0, 0), (0, Hp - H)))
        w2 = jnp.pad(w2, ((0, 0), (0, Hp - H)))
    # Single-pass bf16 MXU for the att_dense matmul (f32 accumulate in-kernel).
    w1 = w1.astype(jnp.bfloat16)

    vmem_budget = 20 << 20            # conservative: fits v5e/v6e/v7x with headroom
    if tb is None:
        tb = _pick_tb(B, L, D2, D3, Hp, vmem_budget)
    grid_b = pl.cdiv(B, tb)
    b_pad = grid_b * tb
    if b_pad != B:
        # Fallback only (awkward B with no suitable multiple-of-8 divisor).
        # Padded rows give uniform softmax over zero values -> zero output rows.
        vecs = jnp.pad(vecs, ((0, b_pad - B), (0, 0), (0, 0)))
        value = jnp.pad(value, ((0, b_pad - B), (0, 0), (0, 0)))

    out = pl.pallas_call(
        _attn_pool_kernel,
        out_shape=jax.ShapeDtypeStruct((b_pad, D3), vecs.dtype),
        grid_spec=pltpu.PrefetchScalarGridSpec(
            num_scalar_prefetch=0,
            grid=(grid_b,),
            in_specs=[
                pl.BlockSpec((tb, L, D2), lambda i: (i, 0, 0)),  # vecs_input
                pl.BlockSpec((tb, L, D3), lambda i: (i, 0, 0)),  # value_input
                pl.BlockSpec((D2, Hp), lambda i: (0, 0)),        # att_dense.weight^T (bf16, padded)
                pl.BlockSpec((1, Hp), lambda i: (0, 0)),         # att_dense.bias (padded)
                pl.BlockSpec((1, Hp), lambda i: (0, 0)),         # dense.weight (padded)
            ],
            out_specs=pl.BlockSpec((tb, D3), lambda i: (i, 0)),
        ),
        compiler_params=pltpu.CompilerParams(
            dimension_semantics=("parallel",),
            # > v5e's 16 MiB scoped default; leaves headroom under v7x's 64 MiB.
            vmem_limit_bytes=40 << 20,
        ),
    )(vecs, value, w1, b1, w2)

    return out[:B] if b_pad != B else out


def reference(vecs, value, w1, b1, w2, b2):
    h = jnp.tanh(vecs @ w1 + b1)                         # (B, L, H)
    scores = jnp.sum(h * w2, axis=-1) + b2[0, 0]         # (B, L)
    att = jax.nn.softmax(scores, axis=1)                 # (B, L)
    return jnp.einsum("bld,bl->bd", value, att)          # (B, D3)


def _make_inputs(key, B, L, D2, D3, H):
    k_v, k_y, k_w1, k_b1, k_w2, k_b2 = jax.random.split(key, 6)
    vecs = jax.random.normal(k_v, (B, L, D2), dtype=jnp.float32)
    value = jax.random.normal(k_y, (B, L, D3), dtype=jnp.float32)
    s1 = 1.0 / jnp.sqrt(jnp.float32(D2))
    s2 = 1.0 / jnp.sqrt(jnp.float32(H))
    w1 = jax.random.uniform(k_w1, (D2, H), jnp.float32, -s1, s1)   # att_dense.weight^T
    b1 = jax.random.uniform(k_b1, (1, H), jnp.float32, -s1, s1)    # att_dense.bias
    w2 = jax.random.uniform(k_w2, (1, H), jnp.float32, -s2, s2)    # dense.weight
    b2 = jax.random.uniform(k_b2, (1, 1), jnp.float32, -s2, s2)    # dense.bias
    return vecs, value, w1, b1, w2, b2


if __name__ == "__main__":
    L, D2, D3, H = 8, 32, 32, 200
    key = jax.random.PRNGKey(0)
    k_small, k_mid, k_big = jax.random.split(key, 3)

    # bf16 matmul operands -> compare against the f32 reference at a loosened
    # (but still tight for this network) tolerance.
    ATOL = RTOL = 1e-2

    # Small case (matches the module's tiny test shapes): single block.
    args = _make_inputs(k_small, 2, L, D2, D3, H)
    out = jax.block_until_ready(attentive_pooling_qky(*args))
    ref = reference(*args)
    assert out.shape == (2, D3)
    assert jnp.allclose(out, ref, atol=ATOL, rtol=RTOL), float(jnp.max(jnp.abs(out - ref)))

    # Ragged case exercising the batch-padding fallback (B=20, tb=8 -> 3 steps).
    args = _make_inputs(k_mid, 20, L, D2, D3, H)
    out = jax.block_until_ready(attentive_pooling_qky(*args, tb=8))
    ref = reference(*args)
    assert out.shape == (20, D3)
    assert jnp.allclose(out, ref, atol=ATOL, rtol=RTOL), float(jnp.max(jnp.abs(out - ref)))

    # Larger case exercising the auto tile choice (B=256 -> tb=128, 2 grid
    # steps, no padding, both v7x cores busy).
    args = _make_inputs(k_big, 256, L, D2, D3, H)
    out = jax.block_until_ready(attentive_pooling_qky(*args))
    ref = reference(*args)
    assert out.shape == (256, D3)
    assert jnp.allclose(out, ref, atol=ATOL, rtol=RTOL), float(jnp.max(jnp.abs(out - ref)))

    print("KERNEL_OK")
</pallas_src>

<mosaic_0001>
module attributes {stable_mosaic.version = 11 : i64} {
  func.func @_attn_pool_kernel(%arg0: i32, %arg1: memref<2x8x32xf32, #tpu.memory_space<vmem>>, %arg2: memref<2x8x32xf32, #tpu.memory_space<vmem>>, %arg3: memref<32x256xbf16, #tpu.memory_space<vmem>>, %arg4: memref<1x256xf32, #tpu.memory_space<vmem>>, %arg5: memref<1x256xf32, #tpu.memory_space<vmem>>, %arg6: memref<2x32xf32, #tpu.memory_space<vmem>>) attributes {dimension_semantics = [#tpu.dimension_semantics<parallel>], iteration_bounds = array<i64: 1>, scalar_prefetch = 0 : i64, scratch_operands = 0 : i64, tpu.core_type = #tpu.core_type<tc>, window_params = [{transform_indices = @transform_0, window_bounds = array<i64: 2, 8, 32>}, {transform_indices = @transform_1, window_bounds = array<i64: 2, 8, 32>}, {pipeline_mode = #tpu.pipeline_mode<synchronous>, transform_indices = @transform_2, window_bounds = array<i64: 32, 256>}, {pipeline_mode = #tpu.pipeline_mode<synchronous>, transform_indices = @transform_3, window_bounds = array<i64: 1, 256>}, {pipeline_mode = #tpu.pipeline_mode<synchronous>, transform_indices = @transform_4, window_bounds = array<i64: 1, 256>}, {transform_indices = @transform_5, window_bounds = array<i64: 2, 32>}]} {
    %c0 = arith.constant 0 : index
    %c0_0 = arith.constant 0 : index
    %c0_1 = arith.constant 0 : index
    %0 = vector.load %arg1[%c0, %c0_0, %c0_1] : memref<2x8x32xf32, #tpu.memory_space<vmem>>, vector<2x8x32xf32>
    %1 = vector.shape_cast %0 : vector<2x8x32xf32> to vector<16x32xf32>
    %2 = arith.truncf %1 : vector<16x32xf32> to vector<16x32xbf16>
    %c0_2 = arith.constant 0 : index
    %c0_3 = arith.constant 0 : index
    %3 = vector.load %arg3[%c0_2, %c0_3] : memref<32x256xbf16, #tpu.memory_space<vmem>>, vector<32x256xbf16>
    %cst = arith.constant dense<0.000000e+00> : vector<16x256xf32>
    %4 = tpu.matmul %2, %3, %cst {dimension_numbers = #tpu.dot_dimension_numbers<[1], [0], [0], [1], [0, 0, 1, 1], [], []>} : vector<16x32xbf16>, vector<32x256xbf16>, vector<16x256xf32> -> vector<16x256xf32>
    %c0_4 = arith.constant 0 : index
    %c0_5 = arith.constant 0 : index
    %5 = vector.load %arg4[%c0_4, %c0_5] : memref<1x256xf32, #tpu.memory_space<vmem>>, vector<1x256xf32>
    %6 = vector.broadcast %5 : vector<1x256xf32> to vector<16x256xf32>
    %7 = arith.addf %4, %6 : vector<16x256xf32>
    %8 = math.tanh %7 : vector<16x256xf32>
    %c0_6 = arith.constant 0 : index
    %c0_7 = arith.constant 0 : index
    %9 = vector.load %arg5[%c0_6, %c0_7] : memref<1x256xf32, #tpu.memory_space<vmem>>, vector<1x256xf32>
    %10 = vector.broadcast %9 : vector<1x256xf32> to vector<16x256xf32>
    %11 = arith.mulf %8, %10 : vector<16x256xf32>
    %cst_8 = arith.constant dense<0.000000e+00> : vector<16xf32>
    %12 = vector.multi_reduction <add>, %11, %cst_8 [1] : vector<16x256xf32> to vector<16xf32>
    %13 = vector.shape_cast %12 : vector<16xf32> to vector<16x1xf32>
    %14 = vector.shape_cast %13 : vector<16x1xf32> to vector<2x8x1xf32>
    %cst_9 = arith.constant dense<0xFF800000> : vector<2x1xf32>
    %15 = vector.multi_reduction <maximumf>, %14, %cst_9 [1] : vector<2x8x1xf32> to vector<2x1xf32>
    %16 = vector.shape_cast %15 : vector<2x1xf32> to vector<2x1x1xf32>
    %17 = vector.broadcast %16 : vector<2x1x1xf32> to vector<2x8x1xf32>
    %18 = arith.subf %14, %17 : vector<2x8x1xf32>
    %19 = math.exp %18 : vector<2x8x1xf32>
    %cst_10 = arith.constant dense<0.000000e+00> : vector<2x1xf32>
    %20 = vector.multi_reduction <add>, %19, %cst_10 [1] : vector<2x8x1xf32> to vector<2x1xf32>
    %21 = vector.shape_cast %20 : vector<2x1xf32> to vector<2x1x1xf32>
    %c0_11 = arith.constant 0 : index
    %c0_12 = arith.constant 0 : index
    %c0_13 = arith.constant 0 : index
    %22 = vector.load %arg2[%c0_11, %c0_12, %c0_13] : memref<2x8x32xf32, #tpu.memory_space<vmem>>, vector<2x8x32xf32>
    %23 = vector.broadcast %19 : vector<2x8x1xf32> to vector<2x8x32xf32>
    %24 = arith.mulf %22, %23 : vector<2x8x32xf32>
    %cst_14 = arith.constant dense<0.000000e+00> : vector<2x32xf32>
    %25 = vector.multi_reduction <add>, %24, %cst_14 [1] : vector<2x8x32xf32> to vector<2x32xf32>
    %26 = vector.shape_cast %21 : vector<2x1x1xf32> to vector<2x1xf32>
    %27 = tpu.reciprocal %26 {approx = true} : vector<2x1xf32> -> vector<2x1xf32>
    %28 = vector.broadcast %27 : vector<2x1xf32> to vector<2x32xf32>
    %29 = arith.mulf %25, %28 : vector<2x32xf32>
    %c0_15 = arith.constant 0 : index
    %c0_16 = arith.constant 0 : index
    %30 = vector.load %arg6[%c0_15, %c0_16] : memref<2x32xf32, #tpu.memory_space<vmem>>, vector<2x32xf32>
    tpu.vector_store %arg6[%c0_15, %c0_16], %29 {strides = array<i32>} : memref<2x32xf32, #tpu.memory_space<vmem>>, vector<2x32xf32>,
    return
  }
  func.func @transform_0(%arg0: i32) -> (i32, i32, i32) {
    %c0_i32 = arith.constant 0 : i32
    %c0_i32_0 = arith.constant 0 : i32
    %c0_i32_1 = arith.constant 0 : i32
    return %arg0, %c0_i32, %c0_i32_0 : i32, i32, i32
  }
  func.func @transform_1(%arg0: i32) -> (i32, i32, i32) {
    %c0_i32 = arith.constant 0 : i32
    %c0_i32_0 = arith.constant 0 : i32
    %c0_i32_1 = arith.constant 0 : i32
    return %arg0, %c0_i32, %c0_i32_0 : i32, i32, i32
  }
  func.func @transform_2(%arg0: i32) -> (i32, i32) {
    %c0_i32 = arith.constant 0 : i32
    %c0_i32_0 = arith.constant 0 : i32
    %c0_i32_1 = arith.constant 0 : i32
    return %c0_i32, %c0_i32_0 : i32, i32
  }
  func.func @transform_3(%arg0: i32) -> (i32, i32) {
    %c0_i32 = arith.constant 0 : i32
    %c0_i32_0 = arith.constant 0 : i32
    %c0_i32_1 = arith.constant 0 : i32
    return %c0_i32, %c0_i32_0 : i32, i32
  }
  func.func @transform_4(%arg0: i32) -> (i32, i32) {
    %c0_i32 = arith.constant 0 : i32
    %c0_i32_0 = arith.constant 0 : i32
    %c0_i32_1 = arith.constant 0 : i32
    return %c0_i32, %c0_i32_0 : i32, i32
  }
  func.func @transform_5(%arg0: i32) -> (i32, i32) {
    %c0_i32 = arith.constant 0 : i32
    %c0_i32_0 = arith.constant 0 : i32
    return %arg0, %c0_i32 : i32, i32
  }
}

</mosaic_0001>

<llo_original>
// kernel: tpu_custom_call.1
$region0: #{tpu_custom_call.1}
  #allocation0 [shape = 'u32[]', space=smem, size = 0x4, offset = 0x4, fixed_abs, tag = 'smem constant byte address 0x4 - core index']
  #allocation1 [shape = 'u32[144,128]{1,0:T(1,128)}', space=vmem, size = 0x12000, scoped, tag = 'internal scratch']
  %s0 = inlined_call_operand.hbm [shape: f32[2,8,32], index: 0, kind: input, shape index: {}]
  %s1 = inlined_call_operand.hbm [shape: f32[2,8,32], index: 1, kind: input, shape index: {}]
  %s2 = inlined_call_operand.hbm [shape: bf16[32,256], index: 2, kind: input, shape index: {}]
  %s3 = inlined_call_operand.vmem [shape: f32[1,256], index: 3, kind: input, shape index: {}]
  %s4 = inlined_call_operand.vmem [shape: f32[1,256], index: 4, kind: input, shape index: {}]
  %s5 = inlined_call_operand.hbm [shape: f32[2,32], index: 5, kind: output, shape index: {}]
  %s6 = sld [smem:[#allocation0]]
  $region42: #{tpu_custom_call.1} parent=0
    _
  %s8 = ssub.s32 1, %s6
  %s9 = scalar_select 0, %s8, %s6
  $region1: #{tpu_custom_call.1} parent=0
    #allocation2 [shape = 'u8[8192]{0}', space=vmem, size = 0x2000, scoped, tag = 'input window, operand 0, single buffered']
    #allocation3 [shape = 's32[1]{0}', space=sflag, size = 0x4, scoped, tag = 'scoped memory for tpu_custom_call.1']
    #allocation4 [shape = 's32[1]{0}', space=sflag, size = 0x4, scoped, tag = 'scoped memory for tpu_custom_call.1']
    #allocation5 [shape = 'u8[8192]{0}', space=vmem, size = 0x2000, scoped, tag = 'input window, operand 1, single buffered']
    #allocation6 [shape = 's32[1]{0}', space=sflag, size = 0x4, scoped, tag = 'scoped memory for tpu_custom_call.1']
    #allocation7 [shape = 'u8[16384]{0}', space=vmem, size = 0x4000, scoped, tag = 'input window, operand 2, single buffered']
    #allocation8 [shape = 'u8[1024]{0}', space=vmem, size = 0x400, scoped, tag = 'output window, operand 0, single buffered']
    %10 = vsyncpa [#allocation3], 0
    %11 = vsyncpa [#allocation6], 0
    %12 = vsyncpa [#allocation4], 0
    // Predicated region
    $region2: #{tpu_custom_call.1} parent=1 // pred_check
      _
    $region3: #{tpu_custom_call.1} parent=1 // pred_check_branch
      %14 = sbr.rel (0) target = $region5
    $region4: #{tpu_custom_call.1} parent=1 // pred_region
      %s16 = ssub.s32 256, 256
      %17 = vsyncadd [#allocation3], %s16
      %s18 = sshll.u32 [#allocation2], 4
      %s19 = int_to_ptr.vmem [resolvable:$true] %s18
      %24 = dma.hbm_to_vmem [thread:$0]  %s0, 256, %s19, [#allocation3], 128, 128, 8
    $region5: #{tpu_custom_call.1} parent=1 // pred_fallthru
      _
    // Predicated region
    $region6: #{tpu_custom_call.1} parent=1 // pred_check
      _
    $region7: #{tpu_custom_call.1} parent=1 // pred_check_branch
      %26 = sbr.rel (0) target = $region9
    $region8: #{tpu_custom_call.1} parent=1 // pred_region
      %s28 = ssub.s32 256, 256
      %29 = vsyncadd [#allocation6], %s28
      %s30 = sshll.u32 [#allocation5], 4
      %s31 = int_to_ptr.vmem [resolvable:$true] %s30
      %36 = dma.hbm_to_vmem [thread:$0]  %s1, 256, %s31, [#allocation6], 128, 128, 8
    $region9: #{tpu_custom_call.1} parent=1 // pred_fallthru
      _
    // Predicated region
    $region10: #{tpu_custom_call.1} parent=1 // pred_check
      _
    $region11: #{tpu_custom_call.1} parent=1 // pred_check_branch
      %38 = sbr.rel (0) target = $region13
    $region12: #{tpu_custom_call.1} parent=1 // pred_region
      %s40 = ssub.s32 512, 512
      %41 = vsyncadd [#allocation6], %s40
      %s42 = sshll.u32 [#allocation7], 4
      %s43 = int_to_ptr.vmem [resolvable:$true] %s42
      %48 = dma.hbm_to_vmem [thread:$0]  %s2, 512, %s43, [#allocation6], 128, 128, 8
    $region13: #{tpu_custom_call.1} parent=1 // pred_fallthru
      _
    // Predicated region
    $region14: #{tpu_custom_call.1} parent=1 // pred_check
      _
    $region15: #{tpu_custom_call.1} parent=1 // pred_check_branch
      %50 = sbr.rel (0) target = $region17
    $region16: #{tpu_custom_call.1} parent=1 // pred_region
      _
    $region17: #{tpu_custom_call.1} parent=1 // pred_fallthru
      _
    // Predicated region
    $region18: #{tpu_custom_call.1} parent=1 // pred_check
      _
    $region19: #{tpu_custom_call.1} parent=1 // pred_check_branch
      %52 = sbr.rel (0) target = $region21
    $region20: #{tpu_custom_call.1} parent=1 // pred_region
      _
    $region21: #{tpu_custom_call.1} parent=1 // pred_fallthru
      _
    // Predicated region
    $region22: #{tpu_custom_call.1} parent=1 // pred_check
      _
    $region23: #{tpu_custom_call.1} parent=1 // pred_check_branch
      %54 = sbr.rel (0) target = $region25
    $region24: #{tpu_custom_call.1} parent=1 // pred_region
      %55 = dma.done [#allocation3], 256
    $region25: #{tpu_custom_call.1} parent=1 // pred_fallthru
      _
    // Predicated region
    $region26: #{tpu_custom_call.1} parent=1 // pred_check
      _
    $region27: #{tpu_custom_call.1} parent=1 // pred_check_branch
      %57 = sbr.rel (0) target = $region29
    $region28: #{tpu_custom_call.1} parent=1 // pred_region
      %58 = dma.done [#allocation6], 256
    $region29: #{tpu_custom_call.1} parent=1 // pred_fallthru
      _
    // Predicated region
    $region30: #{tpu_custom_call.1} parent=1 // pred_check
      _
    $region31: #{tpu_custom_call.1} parent=1 // pred_check_branch
      %60 = sbr.rel (0) target = $region33
    $region32: #{tpu_custom_call.1} parent=1 // pred_region
      %61 = dma.done [#allocation6], 512
    $region33: #{tpu_custom_call.1} parent=1 // pred_fallthru
      _
    %v63 = vld [vmem:[#allocation2] sm:$0xff]
    %v64 = vld [vmem:[#allocation2 + $0x8] sm:$0xff]
    %v65 = vpack.c.bf16 %v64, %v63
    %v66 = vld [vmem:[#allocation7] sm:$0xff]
    %v67 = vld [vmem:[#allocation7 + $0x8] sm:$0xff]
    %v68 = vld [vmem:[#allocation7 + $0x10] sm:$0xff]
    %v69 = vld [vmem:[#allocation7 + $0x18] sm:$0xff]
    %v70 = vld [vmem:[%s3] sm:$0x3]
    %v72 = vlaneseq
    %v73 = vshrl.u32 %v72, 7
    %v74 = vsub.s32 0, %v73
    %v75 = vrot.slane %v70, %v74
    %v76 = vlaneseq
    %v77 = vshrl.u32 %v76, 7
    %v78 = vsub.s32 1, %v77
    %v79 = vrot.slane %v70, %v78
    %v86 = vunpack.c.l.b16 %v66
    %v87 = vunpack.c.h.b16 %v66
    %v88 = vunpack.c.l.b16 %v67
    %v89 = vunpack.c.h.b16 %v67
    %v90 = vunpack.c.l.b16 %v68
    %v91 = vunpack.c.h.b16 %v68
    %v92 = vunpack.c.l.b16 %v69
    %v93 = vunpack.c.h.b16 %v69
    %v94 = vpack.c.b16 %v88, %v86
    %v95 = vpack.c.b16 %v89, %v87
    %v96 = vpack.c.b16 %v92, %v90
    %v97 = vpack.c.b16 %v93, %v91
    %vm102 = vcmask 261120
    %v104 = vsel %vm102, %v65, 0
    %106 = vmatprep.subr.bf16.mxu0 0
    %107 = vmatpush1.bf16.msra.mxu0 0
    %108 = vmatprep.subr.bf16.mxu0 0
    %109 = vmatpush1.bf16.msra.mxu0 0
    %110 = vmatprep.subr.bf16.mxu0 0
    %111 = vmatpush1.bf16.msra.mxu0 0
    %112 = vmatprep.subr.bf16.mxu0 0
    %113 = vmatpush1.bf16.msra.mxu0 0
    %114 = vmatprep.subr.bf16.mxu0 0
    %115 = vmatpush1.bf16.msra.mxu0 0
    %116 = vmatprep.subr.bf16.mxu0 0
    %117 = vmatpush1.bf16.msra.mxu0 0
    %118 = vmatprep.subr.bf16.mxu0 %v97
    %119 = vmatpush1.bf16.msra.mxu0 %v96
    %120 = vmatprep.subr.bf16.mxu0 %v95
    %121 = vmatpush1.bf16.msra.mxu0 %v94
    %122 = vmatprep.subr.bf16.mxu0 0
    %123 = vmatpush2.bf16.msra.mxu0 0
    %124 = vmatprep.subr.bf16.mxu0 0
    %125 = vmatpush2.bf16.msra.mxu0 0
    %126 = vmatprep.subr.bf16.mxu0 0
    %127 = vmatpush2.bf16.msra.mxu0 0
    %128 = vmatprep.subr.bf16.mxu0 0
    %129 = vmatpush2.bf16.msra.mxu0 0
    %130 = vmatprep.subr.bf16.mxu0 0
    %131 = vmatpush2.bf16.msra.mxu0 0
    %132 = vmatprep.subr.bf16.mxu0 0
    %133 = vmatpush2.bf16.msra.mxu0 0
    %134 = vmatprep.subr.bf16.mxu0 0
    %135 = vmatpush2.bf16.msra.mxu0 0
    %136 = vmatprep.subr.bf16.mxu0 0
    %137 = vmatpush2.bf16.msra.mxu0 0
    %138 = vmatprep.mubr.bf16.mxu0 0
    %139 = vmatmul.mubr.bf16.gmra.mxu0 %v104
    %v140 = vpop.f32.mrf.mxu0
    %v141 = vadd.f32 %v75, %v140
    %v142 = vpop.f32.mrf.mxu0
    %v143 = vadd.f32 %v79, %v142
    %v144 = vpop.f32.mrf.mxu0
    %v145 = vadd.f32 %v75, %v144
    %v146 = vpop.f32.mrf.mxu0
    %v147 = vadd.f32 %v79, %v146
    %148 = vdwg.mxu0
    %v149 = vtanh.pop %v141
    %v150 = vtanh.pop %v143
    %v151 = vtanh.pop %v145
    %v152 = vtanh.pop %v147
    %v153 = vld [vmem:[%s4] sm:$0x3]
    %v155 = vlaneseq
    %v156 = vshrl.u32 %v155, 7
    %v157 = vsub.s32 0, %v156
    %v158 = vrot.slane %v153, %v157
    %v159 = vlaneseq
    %v160 = vshrl.u32 %v159, 7
    %v161 = vsub.s32 1, %v160
    %v162 = vrot.slane %v153, %v161
    %v165 = vmul.f32 %v149, %v158
    %v166 = vmul.f32 %v150, %v162
    %v167 = vmul.f32 %v151, %v158
    %v168 = vmul.f32 %v152, %v162
    %v169 = vadd.f32 %v165, %v166
    %170 = vadd.xlane.f32.xlu0 %v169
    %v171 = vpop.xlane.xlu0 %170
    %v172 = vadd.f32 %v167, %v168
    %173 = vadd.xlane.f32.xlu0 %v172
    %v174 = vpop.xlane.xlu0 %173
    %v175 = vrot.slane %v171, 4
    %v176 = vmax.f32 %v171, %v175
    %v177 = vrot.slane %v176, 2
    %v178 = vmax.f32 %v176, %v177
    %v179 = vrot.slane %v178, 1
    %v180 = vmax.f32 %v178, %v179
    %v181 = vrot.slane %v174, 4
    %v182 = vmax.f32 %v174, %v181
    %v183 = vrot.slane %v182, 2
    %v184 = vmax.f32 %v182, %v183
    %v185 = vrot.slane %v184, 1
    %v186 = vmax.f32 %v184, %v185
    %v187 = vsub.f32 %v171, %v180
    %v188 = vsub.f32 %v174, %v186
    %v189 = vmul.f32 %v187, 1.442695
    %v190 = vpow.pop %v189
    %v191 = vmul.f32 %v188, 1.442695
    %v192 = vpow.pop %v191
    %v193 = vrot.slane %v190, 4
    %v194 = vadd.f32 %v190, %v193
    %v195 = vrot.slane %v194, 2
    %v196 = vadd.f32 %v194, %v195
    %v197 = vrot.slane %v196, 1
    %v198 = vadd.f32 %v196, %v197
    %v199 = vrot.slane %v192, 4
    %v200 = vadd.f32 %v192, %v199
    %v201 = vrot.slane %v200, 2
    %v202 = vadd.f32 %v200, %v201
    %v203 = vrot.slane %v202, 1
    %v204 = vadd.f32 %v202, %v203
    %v205 = vld [vmem:[#allocation5] sm:$0xff]
    %v206 = vld [vmem:[#allocation5 + $0x8] sm:$0xff]
    %v207 = vmul.f32 %v205, %v190
    %v208 = vmul.f32 %v206, %v192
    %v209 = vsel %vm102, %v207, 0.0
    %v210 = vrot.slane %v209, 4
    %v211 = vadd.f32 %v209, %v210
    %v212 = vrot.slane %v211, 2
    %v213 = vadd.f32 %v211, %v212
    %v214 = vrot.slane %v213, 1
    %v215 = vadd.f32 %v213, %v214
    %v216 = vsel %vm102, %v208, 0.0
    %v217 = vrot.slane %v216, 4
    %v218 = vadd.f32 %v216, %v217
    %v219 = vrot.slane %v218, 2
    %v220 = vadd.f32 %v218, %v219
    %v221 = vrot.slane %v220, 1
    %v222 = vadd.f32 %v220, %v221
    %v223 = vrcp.pop %v198
    %v224 = vrcp.pop %v204
    %v225 = vmul.f32 %v215, %v223
    %v226 = vmul.f32 %v222, %v224
    %vm229 = vcmask 1041409
    %v230 = vsel %vm229, %v226, %v225
    %vm232 = vcmask 254976
    %233 = vst.msk [vmem:[#allocation8] sm:$0x3] %vm232, %v230
    // Predicated region
    $region34: #{tpu_custom_call.1} parent=1 // pred_check
      _
    $region35: #{tpu_custom_call.1} parent=1 // pred_check_branch
      %235 = sbr.rel (0) target = $region37
    $region36: #{tpu_custom_call.1} parent=1 // pred_region
      %s237 = ssub.s32 32, 32
      %238 = vsyncadd [#allocation4], %s237
      %s240 = sshll.u32 [#allocation8], 4
      %s241 = int_to_ptr.vmem [resolvable:$true] %s240
      %243 = dma.vmem_to_hbm [thread:$0]  %s241, 32, %s5, [#allocation4]
    $region37: #{tpu_custom_call.1} parent=1 // pred_fallthru
      _
    // Predicated region
    $region38: #{tpu_custom_call.1} parent=1 // pred_check
      _
    $region39: #{tpu_custom_call.1} parent=1 // pred_check_branch
      %245 = sbr.rel (0) target = $region41
    $region40: #{tpu_custom_call.1} parent=1 // pred_region
      %246 = dma.done [#allocation4], 32
    $region41: #{tpu_custom_call.1} parent=1 // pred_fallthru
      _
    %247 = vsyncpa [#allocation3], 1
    %248 = vsyncpa [#allocation6], 1
    %249 = vsyncpa [#allocation4], 1

</llo_original>
